<compile_context>
chip_gen: v5e
topology: v5e:2x2
jax: 0.10.0
libtpu: 0.0.40
codegen_flags: <defaults>
</compile_context>

<pallas_src>
import numpy as np
import jax
import jax.numpy as jnp
from jax.experimental import pallas as pl
from jax.experimental.pallas import tpu as pltpu

D = 8      # input_dim (California housing has 8 features)
C1 = 16    # conv1 out channels
C2 = 32    # conv2 out channels
HID = 32   # hidden Linear width (fused away offline)
H2 = (D * C2) // 2   # 128: half of the layer-2 output width


def house_kernel(x_ref, k1_ref, b1_ref, k2a_ref, k2b_ref, b2a_ref, b2b_ref,
                 wfa_ref, wfb_ref, bf_ref, o_ref):
    cdt = k1_ref.dtype                                 # matmul input dtype (bf16 or f32)
    xT = x_ref[...].astype(cdt)                        # (8, tb)   batch on lanes

    # conv1 as block-banded matmul (MXU) + bias + relu         -> (128, tb)
    h1 = jnp.dot(k1_ref[...], xT, preferred_element_type=jnp.float32) + b1_ref[...]
    h1 = jnp.maximum(h1, 0.0).astype(cdt)

    # conv2 half A (MXU) + bias + relu, folded straight into the fused-Linear GEMV
    # (VPU multiply + sublane reduce, all f32 — final matmul never touches the MXU).
    h2a = jnp.dot(k2a_ref[...], h1, preferred_element_type=jnp.float32) + b2a_ref[...]
    h2a = jnp.maximum(h2a, 0.0)                        # (128, tb) f32
    acc = jnp.sum(h2a * wfa_ref[...], axis=0, keepdims=True)      # (1, tb)

    # conv2 half B, same treatment
    h2b = jnp.dot(k2b_ref[...], h1, preferred_element_type=jnp.float32) + b2b_ref[...]
    h2b = jnp.maximum(h2b, 0.0)
    acc = acc + jnp.sum(h2b * wfb_ref[...], axis=0, keepdims=True)

    o_ref[...] = acc + bf_ref[...]                     # (1, tb) lane-dense store


def init_params(key):
    """Same shapes as the PyTorch module's parameters (deterministic)."""
    ks = jax.random.split(key, 8)
    w1 = jax.random.normal(ks[0], (C1, 1, 3, 1), jnp.float32) * 0.1   # Conv2d(1,16,(3,1))
    b1 = jax.random.normal(ks[1], (C1,), jnp.float32) * 0.1
    w2 = jax.random.normal(ks[2], (C2, C1, 3, 1), jnp.float32) * 0.1  # Conv2d(16,32,(3,1))
    b2 = jax.random.normal(ks[3], (C2,), jnp.float32) * 0.1
    wl = jax.random.normal(ks[4], (HID, C2 * D), jnp.float32) * 0.1   # Linear(256,32)
    bl = jax.random.normal(ks[5], (HID,), jnp.float32) * 0.1
    wf = jax.random.normal(ks[6], (1, HID), jnp.float32) * 0.1        # Linear(32,1)
    bf = jax.random.normal(ks[7], (1,), jnp.float32) * 0.1
    return w1, b1, w2, b2, wl, bl, wf, bf


def build_kernel_operands(params, compute_dtype=jnp.bfloat16):
    """Offline lowering: (3,1) convs -> block-banded matrices (transposed: features x features),
    channel-major flatten folded into the Linear permutation, the two Linears fused exactly,
    layer-2 split into two 128-wide halves.  Matmul weights cast to `compute_dtype`; the
    biases and the fused GEMV weights stay f32 (GEMV runs on the VPU in f32)."""
    w1, b1, w2, b2, wl, bl, wf, bf = [np.asarray(p, np.float32) for p in params]
    w1m = w1[:, 0, :, 0]            # (C1, 3)
    w2m = w2[:, :, :, 0]            # (C2, C1, 3)

    K1 = np.zeros((D, D * C1), np.float32)          # y1[b, h*C1+c] = sum_hi x[b,hi]*K1[hi, h*C1+c]
    K2 = np.zeros((D * C1, D * C2), np.float32)     # y2 = relu(y1) @ K2
    for h in range(D):
        for k in range(3):
            hi = h + k - 1                          # padding=(1,0): zero-pad -> skip OOB taps
            if 0 <= hi < D:
                K1[hi, h * C1:(h + 1) * C1] = w1m[:, k]
                K2[hi * C1:(hi + 1) * C1, h * C2:(h + 1) * C2] = w2m[:, :, k].T

    b1v = np.tile(b1, D)            # (D*C1,)  index h*C1+c -> b1[c]
    b2v = np.tile(b2, D)            # (D*C2,)  index h*C2+c -> b2[c]

    # PyTorch flatten index is c*D + h; kernel layout is h*C2 + c -> permute rows.
    wl_r = wl.reshape(HID, C2, D)                                   # (out, c, h)
    wl_perm = np.transpose(wl_r, (2, 1, 0)).reshape(D * C2, HID)    # [(h, c), out]

    # Fuse Linear(256->32) and Linear(32->1): exact (no nonlinearity in between).
    w_final = (wl_perm @ wf.T).reshape(D * C2)                      # (256,)
    b_final = bl.reshape(1, HID) @ wf.T + bf.reshape(1, 1)          # (1, 1)

    # Transpose to "features on sublanes, batch on lanes" orientation.
    K1T = K1.T                      # (128, 8)
    K2T = K2.T                      # (256, 128)
    cdt = compute_dtype
    return [
        jnp.asarray(K1T, cdt),
        jnp.asarray(b1v.reshape(D * C1, 1), jnp.float32),
        jnp.asarray(K2T[:H2], cdt),                       # layer-2 half A weights
        jnp.asarray(K2T[H2:], cdt),                       # layer-2 half B weights
        jnp.asarray(b2v[:H2].reshape(H2, 1), jnp.float32),
        jnp.asarray(b2v[H2:].reshape(H2, 1), jnp.float32),
        jnp.asarray(w_final[:H2].reshape(H2, 1), jnp.float32),   # fused GEMV half A (f32)
        jnp.asarray(w_final[H2:].reshape(H2, 1), jnp.float32),   # fused GEMV half B (f32)
        jnp.asarray(b_final, jnp.float32),                       # (1, 1)
    ]


def _round_up(x, m):
    return ((x + m - 1) // m) * m


def house_forward(x, kernel_ops, *, tile_b=2048):
    """Batch-tiled forward.  x: (B, D) f32 -> (B, 1) f32."""
    B, Din = x.shape
    assert Din == D
    # Batch lives on the lane axis: tiles are multiples of 128 lanes.  Keep the tile
    # count even when >1 so ("parallel",) spreads tiles across both v7x TensorCores.
    ntiles = max(1, pl.cdiv(B, tile_b))
    if ntiles > 1 and ntiles % 2 == 1:
        ntiles += 1
    tb = _round_up(pl.cdiv(B, ntiles), 128)
    Bp = ntiles * tb
    xT = jnp.pad(x, ((0, Bp - B), (0, 0))).T          # (8, Bp): lane-major batch

    # Weights/biases: full-shape blocks with constant index_map -> VMEM-resident
    # across all grid steps (no re-DMA); x / out are pipelined per batch tile.
    weight_specs = [pl.BlockSpec(op.shape, lambda i: (0, 0)) for op in kernel_ops]

    k1t, _, k2at, k2bt, *_ = kernel_ops
    flops = 2 * Bp * (k1t.shape[0] * k1t.shape[1]
                      + (k2at.shape[0] + k2bt.shape[0]) * k2at.shape[1]
                      + (k2at.shape[0] + k2bt.shape[0]))
    bytes_accessed = Bp * (Din + 1) * 4 + sum(int(op.size) * op.dtype.itemsize
                                              for op in kernel_ops)

    out = pl.pallas_call(
        house_kernel,
        out_shape=jax.ShapeDtypeStruct((1, Bp), jnp.float32),
        grid_spec=pltpu.PrefetchScalarGridSpec(
            num_scalar_prefetch=0,
            grid=(ntiles,),
            in_specs=[pl.BlockSpec((Din, tb), lambda i: (0, i))] + weight_specs,
            out_specs=pl.BlockSpec((1, tb), lambda i: (0, i)),
        ),
        compiler_params=pltpu.CompilerParams(
            dimension_semantics=("parallel",),        # shard batch tiles across v7x's 2 TCs
            vmem_limit_bytes=32 * 1024 * 1024,        # well under v7x's 64 MiB budget
        ),
        cost_estimate=pl.CostEstimate(
            flops=flops, transcendentals=0, bytes_accessed=bytes_accessed),
    )(xT, *kernel_ops)
    return out[0, :B].reshape(B, 1)


def reference_forward(x, params):
    """Pure-numpy replica of the PyTorch forward (NCHW convs, channel-major flatten)."""
    w1, b1, w2, b2, wl, bl, wf, bf = [np.asarray(p, np.float32) for p in params]
    x = np.asarray(x, np.float32)
    B = x.shape[0]
    xp = np.pad(x, ((0, 0), (1, 1)))
    y1 = np.zeros((B, C1, D), np.float32)
    for c in range(C1):
        for h in range(D):
            y1[:, c, h] = sum(w1[c, 0, k, 0] * xp[:, h + k] for k in range(3)) + b1[c]
    y1 = np.maximum(y1, 0.0)
    y1p = np.pad(y1, ((0, 0), (0, 0), (1, 1)))
    y2 = np.zeros((B, C2, D), np.float32)
    for co in range(C2):
        for h in range(D):
            acc = np.full((B,), b2[co], np.float32)
            for ci in range(C1):
                for k in range(3):
                    acc = acc + w2[co, ci, k, 0] * y1p[:, ci, h + k]
            y2[:, co, h] = acc
    y2 = np.maximum(y2, 0.0)
    flat = y2.reshape(B, C2 * D)       # matches torch .view(B, -1): index c*D + h
    z = flat @ wl.T + bl
    return z @ wf.T + bf


if __name__ == "__main__":
    key = jax.random.PRNGKey(0)
    pkey, xkey = jax.random.split(key)
    params = init_params(pkey)

    B = 256
    x = jax.random.normal(xkey, (B, D), jnp.float32)   # raw tabular input (B, 8)
    ref = reference_forward(x, params)

    # f32 path with a multi-step batch grid (tight check of the lowering + tiling).
    ops_f32 = build_kernel_operands(params, compute_dtype=jnp.float32)
    out_f32 = jax.block_until_ready(house_forward(x, ops_f32, tile_b=128))   # grid=(2,)
    assert out_f32.shape == (B, 1)
    np.testing.assert_allclose(np.asarray(out_f32), ref, rtol=1e-4, atol=1e-4)

    # bf16 matmul-weight path (MXU dtype on v6e/v7x), default batch tile (single tile here).
    ops_bf16 = build_kernel_operands(params, compute_dtype=jnp.bfloat16)
    out_bf16 = jax.block_until_ready(house_forward(x, ops_bf16))
    assert out_bf16.shape == (B, 1)
    np.testing.assert_allclose(np.asarray(out_bf16), ref, rtol=2e-2, atol=2e-2)

    print("KERNEL_OK")
</pallas_src>

<mosaic_0001>
module attributes {stable_mosaic.version = 11 : i64} {
  func.func @house_kernel(%arg0: i32, %arg1: memref<8x128xf32, #tpu.memory_space<vmem>>, %arg2: memref<128x8xf32, #tpu.memory_space<vmem>>, %arg3: memref<128x1xf32, #tpu.memory_space<vmem>>, %arg4: memref<128x128xf32, #tpu.memory_space<vmem>>, %arg5: memref<128x128xf32, #tpu.memory_space<vmem>>, %arg6: memref<128x1xf32, #tpu.memory_space<vmem>>, %arg7: memref<128x1xf32, #tpu.memory_space<vmem>>, %arg8: memref<128x1xf32, #tpu.memory_space<vmem>>, %arg9: memref<128x1xf32, #tpu.memory_space<vmem>>, %arg10: memref<1x1xf32, #tpu.memory_space<vmem>>, %arg11: memref<1x128xf32, #tpu.memory_space<vmem>>) attributes {dimension_semantics = [#tpu.dimension_semantics<parallel>], iteration_bounds = array<i64: 2>, scalar_prefetch = 0 : i64, scratch_operands = 0 : i64, tpu.core_type = #tpu.core_type<tc>, window_params = [{transform_indices = @transform_0, window_bounds = array<i64: 8, 128>}, {pipeline_mode = #tpu.pipeline_mode<synchronous>, transform_indices = @transform_1, window_bounds = array<i64: 128, 8>}, {pipeline_mode = #tpu.pipeline_mode<synchronous>, transform_indices = @transform_2, window_bounds = array<i64: 128, 1>}, {pipeline_mode = #tpu.pipeline_mode<synchronous>, transform_indices = @transform_3, window_bounds = array<i64: 128, 128>}, {pipeline_mode = #tpu.pipeline_mode<synchronous>, transform_indices = @transform_4, window_bounds = array<i64: 128, 128>}, {pipeline_mode = #tpu.pipeline_mode<synchronous>, transform_indices = @transform_5, window_bounds = array<i64: 128, 1>}, {pipeline_mode = #tpu.pipeline_mode<synchronous>, transform_indices = @transform_6, window_bounds = array<i64: 128, 1>}, {pipeline_mode = #tpu.pipeline_mode<synchronous>, transform_indices = @transform_7, window_bounds = array<i64: 128, 1>}, {pipeline_mode = #tpu.pipeline_mode<synchronous>, transform_indices = @transform_8, window_bounds = array<i64: 128, 1>}, {pipeline_mode = #tpu.pipeline_mode<synchronous>, transform_indices = @transform_9, window_bounds = array<i64: 1, 1>}, {transform_indices = @transform_10, window_bounds = array<i64: 1, 128>}]} {
    %c0 = arith.constant 0 : index
    %c0_0 = arith.constant 0 : index
    %0 = vector.load %arg1[%c0, %c0_0] : memref<8x128xf32, #tpu.memory_space<vmem>>, vector<8x128xf32>
    %c0_1 = arith.constant 0 : index
    %c0_2 = arith.constant 0 : index
    %1 = vector.load %arg2[%c0_1, %c0_2] : memref<128x8xf32, #tpu.memory_space<vmem>>, vector<128x8xf32>
    %cst = arith.constant dense<0.000000e+00> : vector<128x128xf32>
    %2 = tpu.matmul %1, %0, %cst {dimension_numbers = #tpu.dot_dimension_numbers<[1], [0], [0], [1], [0, 0, 1, 1], [], []>} : vector<128x8xf32>, vector<8x128xf32>, vector<128x128xf32> -> vector<128x128xf32>
    %c0_3 = arith.constant 0 : index
    %c0_4 = arith.constant 0 : index
    %3 = vector.load %arg3[%c0_3, %c0_4] : memref<128x1xf32, #tpu.memory_space<vmem>>, vector<128x1xf32>
    %4 = vector.broadcast %3 : vector<128x1xf32> to vector<128x128xf32>
    %5 = arith.addf %2, %4 : vector<128x128xf32>
    %cst_5 = arith.constant 0.000000e+00 : f32
    %6 = vector.broadcast %cst_5 : f32 to vector<128x128xf32>
    %7 = arith.maximumf %5, %6 : vector<128x128xf32>
    %c0_6 = arith.constant 0 : index
    %c0_7 = arith.constant 0 : index
    %8 = vector.load %arg4[%c0_6, %c0_7] : memref<128x128xf32, #tpu.memory_space<vmem>>, vector<128x128xf32>
    %cst_8 = arith.constant dense<0.000000e+00> : vector<128x128xf32>
    %9 = tpu.matmul %8, %7, %cst_8 {dimension_numbers = #tpu.dot_dimension_numbers<[1], [0], [0], [1], [0, 0, 1, 1], [], []>} : vector<128x128xf32>, vector<128x128xf32>, vector<128x128xf32> -> vector<128x128xf32>
    %c0_9 = arith.constant 0 : index
    %c0_10 = arith.constant 0 : index
    %10 = vector.load %arg6[%c0_9, %c0_10] : memref<128x1xf32, #tpu.memory_space<vmem>>, vector<128x1xf32>
    %11 = vector.broadcast %10 : vector<128x1xf32> to vector<128x128xf32>
    %12 = arith.addf %9, %11 : vector<128x128xf32>
    %cst_11 = arith.constant 0.000000e+00 : f32
    %13 = vector.broadcast %cst_11 : f32 to vector<128x128xf32>
    %14 = arith.maximumf %12, %13 : vector<128x128xf32>
    %c0_12 = arith.constant 0 : index
    %c0_13 = arith.constant 0 : index
    %15 = vector.load %arg8[%c0_12, %c0_13] : memref<128x1xf32, #tpu.memory_space<vmem>>, vector<128x1xf32>
    %16 = vector.broadcast %15 : vector<128x1xf32> to vector<128x128xf32>
    %17 = arith.mulf %14, %16 : vector<128x128xf32>
    %cst_14 = arith.constant dense<0.000000e+00> : vector<128xf32>
    %18 = vector.multi_reduction <add>, %17, %cst_14 [0] : vector<128x128xf32> to vector<128xf32>
    %19 = vector.shape_cast %18 : vector<128xf32> to vector<1x128xf32>
    %c0_15 = arith.constant 0 : index
    %c0_16 = arith.constant 0 : index
    %20 = vector.load %arg5[%c0_15, %c0_16] : memref<128x128xf32, #tpu.memory_space<vmem>>, vector<128x128xf32>
    %cst_17 = arith.constant dense<0.000000e+00> : vector<128x128xf32>
    %21 = tpu.matmul %20, %7, %cst_17 {dimension_numbers = #tpu.dot_dimension_numbers<[1], [0], [0], [1], [0, 0, 1, 1], [], []>} : vector<128x128xf32>, vector<128x128xf32>, vector<128x128xf32> -> vector<128x128xf32>
    %c0_18 = arith.constant 0 : index
    %c0_19 = arith.constant 0 : index
    %22 = vector.load %arg7[%c0_18, %c0_19] : memref<128x1xf32, #tpu.memory_space<vmem>>, vector<128x1xf32>
    %23 = vector.broadcast %22 : vector<128x1xf32> to vector<128x128xf32>
    %24 = arith.addf %21, %23 : vector<128x128xf32>
    %cst_20 = arith.constant 0.000000e+00 : f32
    %25 = vector.broadcast %cst_20 : f32 to vector<128x128xf32>
    %26 = arith.maximumf %24, %25 : vector<128x128xf32>
    %c0_21 = arith.constant 0 : index
    %c0_22 = arith.constant 0 : index
    %27 = vector.load %arg9[%c0_21, %c0_22] : memref<128x1xf32, #tpu.memory_space<vmem>>, vector<128x1xf32>
    %28 = vector.broadcast %27 : vector<128x1xf32> to vector<128x128xf32>
    %29 = arith.mulf %26, %28 : vector<128x128xf32>
    %cst_23 = arith.constant dense<0.000000e+00> : vector<128xf32>
    %30 = vector.multi_reduction <add>, %29, %cst_23 [0] : vector<128x128xf32> to vector<128xf32>
    %31 = vector.shape_cast %30 : vector<128xf32> to vector<1x128xf32>
    %32 = arith.addf %19, %31 : vector<1x128xf32>
    %c0_24 = arith.constant 0 : index
    %c0_25 = arith.constant 0 : index
    %33 = vector.load %arg10[%c0_24, %c0_25] : memref<1x1xf32, #tpu.memory_space<vmem>>, vector<1x1xf32>
    %34 = vector.broadcast %33 : vector<1x1xf32> to vector<1x128xf32>
    %35 = arith.addf %32, %34 : vector<1x128xf32>
    %c0_26 = arith.constant 0 : index
    %c0_27 = arith.constant 0 : index
    %36 = vector.load %arg11[%c0_26, %c0_27] : memref<1x128xf32, #tpu.memory_space<vmem>>, vector<1x128xf32>
    tpu.vector_store %arg11[%c0_26, %c0_27], %35 {strides = array<i32>} : memref<1x128xf32, #tpu.memory_space<vmem>>, vector<1x128xf32>,
    return
  }
  func.func @transform_0(%arg0: i32) -> (i32, i32) {
    %c0_i32 = arith.constant 0 : i32
    %c0_i32_0 = arith.constant 0 : i32
    return %c0_i32, %arg0 : i32, i32
  }
  func.func @transform_1(%arg0: i32) -> (i32, i32) {
    %c0_i32 = arith.constant 0 : i32
    %c0_i32_0 = arith.constant 0 : i32
    %c0_i32_1 = arith.constant 0 : i32
    return %c0_i32, %c0_i32_0 : i32, i32
  }
  func.func @transform_2(%arg0: i32) -> (i32, i32) {
    %c0_i32 = arith.constant 0 : i32
    %c0_i32_0 = arith.constant 0 : i32
    %c0_i32_1 = arith.constant 0 : i32
    return %c0_i32, %c0_i32_0 : i32, i32
  }
  func.func @transform_3(%arg0: i32) -> (i32, i32) {
    %c0_i32 = arith.constant 0 : i32
    %c0_i32_0 = arith.constant 0 : i32
    %c0_i32_1 = arith.constant 0 : i32
    return %c0_i32, %c0_i32_0 : i32, i32
  }
  func.func @transform_4(%arg0: i32) -> (i32, i32) {
    %c0_i32 = arith.constant 0 : i32
    %c0_i32_0 = arith.constant 0 : i32
    %c0_i32_1 = arith.constant 0 : i32
    return %c0_i32, %c0_i32_0 : i32, i32
  }
  func.func @transform_5(%arg0: i32) -> (i32, i32) {
    %c0_i32 = arith.constant 0 : i32
    %c0_i32_0 = arith.constant 0 : i32
    %c0_i32_1 = arith.constant 0 : i32
    return %c0_i32, %c0_i32_0 : i32, i32
  }
  func.func @transform_6(%arg0: i32) -> (i32, i32) {
    %c0_i32 = arith.constant 0 : i32
    %c0_i32_0 = arith.constant 0 : i32
    %c0_i32_1 = arith.constant 0 : i32
    return %c0_i32, %c0_i32_0 : i32, i32
  }
  func.func @transform_7(%arg0: i32) -> (i32, i32) {
    %c0_i32 = arith.constant 0 : i32
    %c0_i32_0 = arith.constant 0 : i32
    %c0_i32_1 = arith.constant 0 : i32
    return %c0_i32, %c0_i32_0 : i32, i32
  }
  func.func @transform_8(%arg0: i32) -> (i32, i32) {
    %c0_i32 = arith.constant 0 : i32
    %c0_i32_0 = arith.constant 0 : i32
    %c0_i32_1 = arith.constant 0 : i32
    return %c0_i32, %c0_i32_0 : i32, i32
  }
  func.func @transform_9(%arg0: i32) -> (i32, i32) {
    %c0_i32 = arith.constant 0 : i32
    %c0_i32_0 = arith.constant 0 : i32
    %c0_i32_1 = arith.constant 0 : i32
    return %c0_i32, %c0_i32_0 : i32, i32
  }
  func.func @transform_10(%arg0: i32) -> (i32, i32) {
    %c0_i32 = arith.constant 0 : i32
    %c0_i32_0 = arith.constant 0 : i32
    return %c0_i32, %arg0 : i32, i32
  }
}

</mosaic_0001>

<llo_original>
// kernel: tpu_custom_call.1
$region0: #{tpu_custom_call.1}
  #allocation0 [shape = 'u32[]', space=smem, size = 0x4, offset = 0x4, fixed_abs, tag = 'smem constant byte address 0x4 - core index']
  #allocation1 [shape = 'u32[72,128]{1,0:T(1,128)}', space=vmem, size = 0x9000, scoped, tag = 'internal scratch']
  #allocation2 [shape = 'f32[1,1]{1,0:T(1,128)S(1)}', space=vmem, size = 0x200, scoped, tag = 'scoped memory for tpu_custom_call.1']
  %s0 = inlined_call_operand.vmem [shape: f32[8,256], index: 0, kind: input, shape index: {}]
  %s1 = inlined_call_operand.vmem [shape: f32[128,8], index: 1, kind: input, shape index: {}]
  %s2 = inlined_call_operand.vmem [shape: f32[128,1], index: 2, kind: input, shape index: {}]
  %s3 = inlined_call_operand.vmem [shape: f32[128,128], index: 3, kind: input, shape index: {}]
  %s4 = inlined_call_operand.vmem [shape: f32[128,128], index: 4, kind: input, shape index: {}]
  %s5 = inlined_call_operand.vmem [shape: f32[128,1], index: 5, kind: input, shape index: {}]
  %s6 = inlined_call_operand.vmem [shape: f32[128,1], index: 6, kind: input, shape index: {}]
  %s7 = inlined_call_operand.vmem [shape: f32[128,1], index: 7, kind: input, shape index: {}]
  %s8 = inlined_call_operand.vmem [shape: f32[128,1], index: 8, kind: input, shape index: {}]
  %s9 = inlined_call_operand.<no memory space> [shape: f32[1,1], index: 9, kind: input, shape index: {}]
  %s10 = inlined_call_operand.hbm [shape: f32[1,256], index: 10, kind: output, shape index: {}]
  %s11 = sld [smem:[#allocation0]]
  $region73: #{tpu_custom_call.1} parent=0
    _
  %s13 = ssub.s32 1, %s11
  %s14 = scalar_select 0, %s13, %s11
  %v15 = vstv %s9
  %16 = vst [vmem:[#allocation2] sm:$0x1] %v15
  $region1: #{tpu_custom_call.1} parent=0
    #allocation3 [shape = 'u8[1024]{0}', space=vmem, size = 0x400, scoped, tag = 'output window, operand 0']
    #allocation4 [shape = 's32[2]{0}', space=sflag, size = 0x8, scoped, tag = 'scoped memory for tpu_custom_call.1']
    %17 = vsyncpa [#allocation4], 0
    %s18 = scalar_lea.sflag [#allocation4], 1
    %19 = vsyncpa %s18, 0
    loop: start=0, step=1, limit=4
    $region2: #{tpu_custom_call.1} parent=1 // loop_pre_header
      _
    $region3: #{tpu_custom_call.1} parent=1 // loop_header
      %s21 = sphi 0, %s25
      %p22 = scmp.ge.s32.totalorder %s21, 4
      %s31 = sphi 0, %s33
      %s34 = sphi 0, %s31
      %s35 = sphi 0, %s34
      %s51 = sphi 0, %s35
      %s55 = sphi 0, %s55
      %s57 = sphi 0, %s55
      %s58 = sphi 0, %s57
      %s72 = sphi 0, %s58
      %s76 = sphi 0, %s76
      %s78 = sphi 0, %s76
      %s79 = sphi 0, %s78
      %s93 = sphi 0, %s79
      %s97 = sphi 0, %s97
      %s99 = sphi 0, %s97
      %s100 = sphi 0, %s99
      %s114 = sphi 0, %s100
      %s118 = sphi 0, %s118
      %s120 = sphi 0, %s118
      %s121 = sphi 0, %s120
      %s135 = sphi 0, %s121
      %s139 = sphi 0, %s139
      %s141 = sphi 0, %s139
      %s142 = sphi 0, %s141
      %s156 = sphi 0, %s142
      %s160 = sphi 0, %s160
      %s162 = sphi 0, %s160
      %s163 = sphi 0, %s162
      %s177 = sphi 0, %s163
      %s181 = sphi 0, %s181
      %s183 = sphi 0, %s181
      %s184 = sphi 0, %s183
      %s198 = sphi 0, %s184
      %s202 = sphi 0, %s202
      %s204 = sphi 0, %s202
      %s205 = sphi 0, %s204
      %s219 = sphi 0, %s205
      %s223 = sphi 0, %s223
      %s225 = sphi 0, %s223
      %s226 = sphi 0, %s225
      %s240 = sphi 0, %s226
      %s246 = sphi 0, %s248
      %s249 = sphi 0, %s246
      %s250 = sphi 0, %s249
      %s266 = sphi 0, %s250
    $region4: #{tpu_custom_call.1} parent=1 // loop_header_branch
      %24 = sbr.rel (%p22) target = $region8
    $region5: #{tpu_custom_call.1} parent=1 // loop_body
      %s26 = ssub.s32 %s21, 1
      %s27 = ssub.s32 %s21, 2
      %s28 = sadd.s32 %s21, 1
      %s29 = ssub.s32 %s21, %s28
      %p30 = scmp.eq.s32.totalorder %s29, 0
      %s32 = sadd.s32 %s31, 1
      %s33 = scalar_select %p30, %s31, %s32
      %p36 = pneg %p30
      %p37 = scmp.eq.s32.totalorder %s21, 1
      %p38 = por %p36, %p37
      %p39 = scmp.ne.s32.totalorder %s31, %s34
      %p40 = scmp.eq.s32.totalorder %s21, 0
      %p41 = por %p39, %p40
      %p42 = scmp.ne.s32.totalorder %s31, %s34
      %p43 = scmp.eq.s32.totalorder %s26, 1
      %p44 = por %p42, %p43
      %p45 = scmp.ne.s32.totalorder %s34, %s35
      %p46 = scmp.eq.s32.totalorder %s26, 0
      %p47 = por %p45, %p46
      %p48 = scmp.ne.s32.totalorder %s34, %s35
      %p49 = scmp.eq.s32.totalorder %s27, 1
      %p50 = por %p48, %p49
      %p52 = scmp.ne.s32.totalorder %s35, %s51
      %p53 = scmp.eq.s32.totalorder %s27, 0
      %p54 = por %p52, %p53
      %s56 = sadd.s32 %s55, 1
      %p59 = scmp.eq.s32.totalorder %s21, 1
      %p60 = scmp.ne.s32.totalorder %s55, %s57
      %p61 = scmp.eq.s32.totalorder %s21, 0
      %p62 = por %p60, %p61
      %p63 = scmp.ne.s32.totalorder %s55, %s57
      %p64 = scmp.eq.s32.totalorder %s26, 1
      %p65 = por %p63, %p64
      %p66 = scmp.ne.s32.totalorder %s57, %s58
      %p67 = scmp.eq.s32.totalorder %s26, 0
      %p68 = por %p66, %p67
      %p69 = scmp.ne.s32.totalorder %s57, %s58
      %p70 = scmp.eq.s32.totalorder %s27, 1
      %p71 = por %p69, %p70
      %p73 = scmp.ne.s32.totalorder %s58, %s72
      %p74 = scmp.eq.s32.totalorder %s27, 0
      %p75 = por %p73, %p74
      %s77 = sadd.s32 %s76, 1
      %p80 = scmp.eq.s32.totalorder %s21, 1
      %p81 = scmp.ne.s32.totalorder %s76, %s78
      %p82 = scmp.eq.s32.totalorder %s21, 0
      %p83 = por %p81, %p82
      %p84 = scmp.ne.s32.totalorder %s76, %s78
      %p85 = scmp.eq.s32.totalorder %s26, 1
      %p86 = por %p84, %p85
      %p87 = scmp.ne.s32.totalorder %s78, %s79
      %p88 = scmp.eq.s32.totalorder %s26, 0
      %p89 = por %p87, %p88
      %p90 = scmp.ne.s32.totalorder %s78, %s79
      %p91 = scmp.eq.s32.totalorder %s27, 1
      %p92 = por %p90, %p91
      %p94 = scmp.ne.s32.totalorder %s79, %s93
      %p95 = scmp.eq.s32.totalorder %s27, 0
      %p96 = por %p94, %p95
      %s98 = sadd.s32 %s97, 1
      %p101 = scmp.eq.s32.totalorder %s21, 1
      %p102 = scmp.ne.s32.totalorder %s97, %s99
      %p103 = scmp.eq.s32.totalorder %s21, 0
      %p104 = por %p102, %p103
      %p105 = scmp.ne.s32.totalorder %s97, %s99
      %p106 = scmp.eq.s32.totalorder %s26, 1
      %p107 = por %p105, %p106
      %p108 = scmp.ne.s32.totalorder %s99, %s100
      %p109 = scmp.eq.s32.totalorder %s26, 0
      %p110 = por %p108, %p109
      %p111 = scmp.ne.s32.totalorder %s99, %s100
      %p112 = scmp.eq.s32.totalorder %s27, 1
      %p113 = por %p111, %p112
      %p115 = scmp.ne.s32.totalorder %s100, %s114
      %p116 = scmp.eq.s32.totalorder %s27, 0
      %p117 = por %p115, %p116
      %s119 = sadd.s32 %s118, 1
      %p122 = scmp.eq.s32.totalorder %s21, 1
      %p123 = scmp.ne.s32.totalorder %s118, %s120
      %p124 = scmp.eq.s32.totalorder %s21, 0
      %p125 = por %p123, %p124
      %p126 = scmp.ne.s32.totalorder %s118, %s120
      %p127 = scmp.eq.s32.totalorder %s26, 1
      %p128 = por %p126, %p127
      %p129 = scmp.ne.s32.totalorder %s120, %s121
      %p130 = scmp.eq.s32.totalorder %s26, 0
      %p131 = por %p129, %p130
      %p132 = scmp.ne.s32.totalorder %s120, %s121
      %p133 = scmp.eq.s32.totalorder %s27, 1
      %p134 = por %p132, %p133
      %p136 = scmp.ne.s32.totalorder %s121, %s135
      %p137 = scmp.eq.s32.totalorder %s27, 0
      %p138 = por %p136, %p137
      %s140 = sadd.s32 %s139, 1
      %p143 = scmp.eq.s32.totalorder %s21, 1
      %p144 = scmp.ne.s32.totalorder %s139, %s141
      %p145 = scmp.eq.s32.totalorder %s21, 0
      %p146 = por %p144, %p145
      %p147 = scmp.ne.s32.totalorder %s139, %s141
      %p148 = scmp.eq.s32.totalorder %s26, 1
      %p149 = por %p147, %p148
      %p150 = scmp.ne.s32.totalorder %s141, %s142
      %p151 = scmp.eq.s32.totalorder %s26, 0
      %p152 = por %p150, %p151
      %p153 = scmp.ne.s32.totalorder %s141, %s142
      %p154 = scmp.eq.s32.totalorder %s27, 1
      %p155 = por %p153, %p154
      %p157 = scmp.ne.s32.totalorder %s142, %s156
      %p158 = scmp.eq.s32.totalorder %s27, 0
      %p159 = por %p157, %p158
      %s161 = sadd.s32 %s160, 1
      %p164 = scmp.eq.s32.totalorder %s21, 1
      %p165 = scmp.ne.s32.totalorder %s160, %s162
      %p166 = scmp.eq.s32.totalorder %s21, 0
      %p167 = por %p165, %p166
      %p168 = scmp.ne.s32.totalorder %s160, %s162
      %p169 = scmp.eq.s32.totalorder %s26, 1
      %p170 = por %p168, %p169
      %p171 = scmp.ne.s32.totalorder %s162, %s163
      %p172 = scmp.eq.s32.totalorder %s26, 0
      %p173 = por %p171, %p172
      %p174 = scmp.ne.s32.totalorder %s162, %s163
      %p175 = scmp.eq.s32.totalorder %s27, 1
      %p176 = por %p174, %p175
      %p178 = scmp.ne.s32.totalorder %s163, %s177
      %p179 = scmp.eq.s32.totalorder %s27, 0
      %p180 = por %p178, %p179
      %s182 = sadd.s32 %s181, 1
      %p185 = scmp.eq.s32.totalorder %s21, 1
      %p186 = scmp.ne.s32.totalorder %s181, %s183
      %p187 = scmp.eq.s32.totalorder %s21, 0
      %p188 = por %p186, %p187
      %p189 = scmp.ne.s32.totalorder %s181, %s183
      %p190 = scmp.eq.s32.totalorder %s26, 1
      %p191 = por %p189, %p190
      %p192 = scmp.ne.s32.totalorder %s183, %s184
      %p193 = scmp.eq.s32.totalorder %s26, 0
      %p194 = por %p192, %p193
      %p195 = scmp.ne.s32.totalorder %s183, %s184
      %p196 = scmp.eq.s32.totalorder %s27, 1
      %p197 = por %p195, %p196
      %p199 = scmp.ne.s32.totalorder %s184, %s198
      %p200 = scmp.eq.s32.totalorder %s27, 0
      %p201 = por %p199, %p200
      %s203 = sadd.s32 %s202, 1
      %p206 = scmp.eq.s32.totalorder %s21, 1
      %p207 = scmp.ne.s32.totalorder %s202, %s204
      %p208 = scmp.eq.s32.totalorder %s21, 0
      %p209 = por %p207, %p208
      %p210 = scmp.ne.s32.totalorder %s202, %s204
      %p211 = scmp.eq.s32.totalorder %s26, 1
      %p212 = por %p210, %p211
      %p213 = scmp.ne.s32.totalorder %s204, %s205
      %p214 = scmp.eq.s32.totalorder %s26, 0
      %p215 = por %p213, %p214
      %p216 = scmp.ne.s32.totalorder %s204, %s205
      %p217 = scmp.eq.s32.totalorder %s27, 1
      %p218 = por %p216, %p217
      %p220 = scmp.ne.s32.totalorder %s205, %s219
      %p221 = scmp.eq.s32.totalorder %s27, 0
      %p222 = por %p220, %p221
      %s224 = sadd.s32 %s223, 1
      %p227 = scmp.eq.s32.totalorder %s21, 1
      %p228 = scmp.ne.s32.totalorder %s223, %s225
      %p229 = scmp.eq.s32.totalorder %s21, 0
      %p230 = por %p228, %p229
      %p231 = scmp.ne.s32.totalorder %s223, %s225
      %p232 = scmp.eq.s32.totalorder %s26, 1
      %p233 = por %p231, %p232
      %p234 = scmp.ne.s32.totalorder %s225, %s226
      %p235 = scmp.eq.s32.totalorder %s26, 0
      %p236 = por %p234, %p235
      %p237 = scmp.ne.s32.totalorder %s225, %s226
      %p238 = scmp.eq.s32.totalorder %s27, 1
      %p239 = por %p237, %p238
      %p241 = scmp.ne.s32.totalorder %s226, %s240
      %p242 = scmp.eq.s32.totalorder %s27, 0
      %p243 = por %p241, %p242
      %s244 = ssub.s32 %s21, %s28
      %p245 = scmp.eq.s32.totalorder %s244, 0
      %s247 = sadd.s32 %s246, 1
      %s248 = scalar_select %p245, %s246, %s247
      %p251 = pneg %p245
      %p252 = scmp.eq.s32.totalorder %s21, 1
      %p253 = por %p251, %p252
      %p254 = scmp.ne.s32.totalorder %s246, %s249
      %p255 = scmp.eq.s32.totalorder %s21, 0
      %p256 = por %p254, %p255
      %p257 = scmp.ne.s32.totalorder %s246, %s249
      %p258 = scmp.eq.s32.totalorder %s26, 1
      %p259 = por %p257, %p258
      %p260 = scmp.ne.s32.totalorder %s249, %s250
      %p261 = scmp.eq.s32.totalorder %s26, 0
      %p262 = por %p260, %p261
      %p263 = scmp.ne.s32.totalorder %s249, %s250
      %p264 = scmp.eq.s32.totalorder %s27, 1
      %p265 = por %p263, %p264
      %p267 = scmp.ne.s32.totalorder %s250, %s266
      %p268 = scmp.eq.s32.totalorder %s27, 0
      %p269 = por %p267, %p268
      %p270 = scmp.le.s32.totalorder 1, %s21
      %p271 = scmp.lt.s32.totalorder %s21, 3
      %p272 = pnand %p270, %p271
      %p273 = pneg %p272
      // Predicated region
      $region9: #{tpu_custom_call.1} parent=5 // pred_check
        _
      $region10: #{tpu_custom_call.1} parent=5 // pred_check_branch
        %275 = sbr.rel (%p272) target = $region12
      $region11: #{tpu_custom_call.1} parent=5 // pred_region
        %s276 = ssub.s32 %s21, 1
        // Predicated region
        $region13: #{tpu_custom_call.1} parent=11 // pred_check
          %p277 = pneg %p68
        $region14: #{tpu_custom_call.1} parent=11 // pred_check_branch
          %279 = sbr.rel (%p277) target = $region16
        $region15: #{tpu_custom_call.1} parent=11 // pred_region
          _
        $region16: #{tpu_custom_call.1} parent=11 // pred_fallthru
          _
        // Predicated region
        $region17: #{tpu_custom_call.1} parent=11 // pred_check
          %p280 = pneg %p89
        $region18: #{tpu_custom_call.1} parent=11 // pred_check_branch
          %282 = sbr.rel (%p280) target = $region20
        $region19: #{tpu_custom_call.1} parent=11 // pred_region
          _
        $region20: #{tpu_custom_call.1} parent=11 // pred_fallthru
          _
        // Predicated region
        $region21: #{tpu_custom_call.1} parent=11 // pred_check
          %p283 = pneg %p110
        $region22: #{tpu_custom_call.1} parent=11 // pred_check_branch
          %285 = sbr.rel (%p283) target = $region24
        $region23: #{tpu_custom_call.1} parent=11 // pred_region
          _
        $region24: #{tpu_custom_call.1} parent=11 // pred_fallthru
          _
        // Predicated region
        $region25: #{tpu_custom_call.1} parent=11 // pred_check
          %p286 = pneg %p131
        $region26: #{tpu_custom_call.1} parent=11 // pred_check_branch
          %288 = sbr.rel (%p286) target = $region28
        $region27: #{tpu_custom_call.1} parent=11 // pred_region
          _
        $region28: #{tpu_custom_call.1} parent=11 // pred_fallthru
          _
        // Predicated region
        $region29: #{tpu_custom_call.1} parent=11 // pred_check
          %p289 = pneg %p152
        $region30: #{tpu_custom_call.1} parent=11 // pred_check_branch
          %291 = sbr.rel (%p289) target = $region32
        $region31: #{tpu_custom_call.1} parent=11 // pred_region
          _
        $region32: #{tpu_custom_call.1} parent=11 // pred_fallthru
          _
        // Predicated region
        $region33: #{tpu_custom_call.1} parent=11 // pred_check
          %p292 = pneg %p173
        $region34: #{tpu_custom_call.1} parent=11 // pred_check_branch
          %294 = sbr.rel (%p292) target = $region36
        $region35: #{tpu_custom_call.1} parent=11 // pred_region
          _
        $region36: #{tpu_custom_call.1} parent=11 // pred_fallthru
          _
        // Predicated region
        $region37: #{tpu_custom_call.1} parent=11 // pred_check
          %p295 = pneg %p194
        $region38: #{tpu_custom_call.1} parent=11 // pred_check_branch
          %297 = sbr.rel (%p295) target = $region40
        $region39: #{tpu_custom_call.1} parent=11 // pred_region
          _
        $region40: #{tpu_custom_call.1} parent=11 // pred_fallthru
          _
        // Predicated region
        $region41: #{tpu_custom_call.1} parent=11 // pred_check
          %p298 = pneg %p215
        $region42: #{tpu_custom_call.1} parent=11 // pred_check_branch
          %300 = sbr.rel (%p298) target = $region44
        $region43: #{tpu_custom_call.1} parent=11 // pred_region
          _
        $region44: #{tpu_custom_call.1} parent=11 // pred_fallthru
          _
        // Predicated region
        $region45: #{tpu_custom_call.1} parent=11 // pred_check
          %p301 = pneg %p236
        $region46: #{tpu_custom_call.1} parent=11 // pred_check_branch
          %303 = sbr.rel (%p301) target = $region48
        $region47: #{tpu_custom_call.1} parent=11 // pred_region
          _
        $region48: #{tpu_custom_call.1} parent=11 // pred_fallthru
          _
      $region12: #{tpu_custom_call.1} parent=5 // pred_fallthru
        _
      %p304 = scmp.lt.s32.totalorder %s21, 2
      // Predicated region
      $region49: #{tpu_custom_call.1} parent=5 // pred_check
        %p305 = pneg %p304
      $region50: #{tpu_custom_call.1} parent=5 // pred_check_branch
        %307 = sbr.rel (%p305) target = $region52
      $region51: #{tpu_custom_call.1} parent=5 // pred_region
        // Predicated region
        $region53: #{tpu_custom_call.1} parent=51 // pred_check
          %p308 = pneg %p41
        $region54: #{tpu_custom_call.1} parent=51 // pred_check_branch
          %310 = sbr.rel (%p308) target = $region56
        $region55: #{tpu_custom_call.1} parent=51 // pred_region
          %p311 = scmp.lt.s32.totalorder %s21, 1
          %s312 = scalar_select %p311, %s21, 1
          %s313 = smul.addr %s312, 8
          %s314 = scalar_lea.vmem %s0, %s313
        $region56: #{tpu_custom_call.1} parent=51 // pred_fallthru
          _
      $region52: #{tpu_custom_call.1} parent=5 // pred_fallthru
        _
      %p315 = scmp.le.s32.totalorder 1, %s21
      %p316 = scmp.lt.s32.totalorder %s21, 3
      %p317 = pnand %p315, %p316
      %p318 = pneg %p317
      // Predicated region
      $region57: #{tpu_custom_call.1} parent=5 // pred_check
        _
      $region58: #{tpu_custom_call.1} parent=5 // pred_check_branch
        %320 = sbr.rel (%p317) target = $region60
      $region59: #{tpu_custom_call.1} parent=5 // pred_region
        %s321 = ssub.s32 %s21, 1
        %p322 = scmp.lt.s32.totalorder %s26, 1
        %s323 = scalar_select %p322, %s26, 1
        %s324 = smul.addr %s323, 8
        %s325 = scalar_lea.vmem %s0, %s324
        %p326 = pneg %p47
        %p327 = pneg %p44
        %p328 = pneg %p68
        %p329 = pneg %p65
        %p330 = pneg %p89
        %p331 = pneg %p86
        %p332 = pneg %p110
        %p333 = pneg %p107
        %p334 = pneg %p131
        %p335 = pneg %p128
        %p336 = pneg %p152
        %p337 = pneg %p149
        %p338 = pneg %p173
        %p339 = pneg %p170
        %p340 = pneg %p194
        %p341 = pneg %p191
        %p342 = pneg %p215
        %p343 = pneg %p212
        %p344 = pneg %p236
        %p345 = pneg %p233
        %p346 = pneg %p262
        %p347 = pneg %p259
        %s348 = sand.u32 %s249, 1
        %s349 = scalar_lea.sflag [#allocation4], %s348
        %s350 = sand.u32 %s249, 1
        %s351 = scalar_lea.vmem [#allocation3], %s350
        %p352 = scmp.lt.s32.totalorder %s26, 1
        %s353 = scalar_select %p352, %s26, 1
        %s354 = smul.addr %s353, 8
        %s355 = scalar_lea.vmem %s0, %s354
        %v356 = vld [vmem:[%s355] sm:$0xff]
        %v357 = vld [vmem:[%s1] sm:$0xff]
        %v358 = vld [vmem:[%s1 + $0x8] sm:$0xff]
        %v359 = vld [vmem:[%s1 + $0x10] sm:$0xff]
        %v360 = vld [vmem:[%s1 + $0x18] sm:$0xff]
        %v361 = vld [vmem:[%s1 + $0x20] sm:$0xff]
        %v362 = vld [vmem:[%s1 + $0x28] sm:$0xff]
        %v363 = vld [vmem:[%s1 + $0x30] sm:$0xff]
        %v364 = vld [vmem:[%s1 + $0x38] sm:$0xff]
        %v365 = vld [vmem:[%s1 + $0x40] sm:$0xff]
        %v366 = vld [vmem:[%s1 + $0x48] sm:$0xff]
        %v367 = vld [vmem:[%s1 + $0x50] sm:$0xff]
        %v368 = vld [vmem:[%s1 + $0x58] sm:$0xff]
        %v369 = vld [vmem:[%s1 + $0x60] sm:$0xff]
        %v370 = vld [vmem:[%s1 + $0x68] sm:$0xff]
        %v371 = vld [vmem:[%s1 + $0x70] sm:$0xff]
        %v372 = vld [vmem:[%s1 + $0x78] sm:$0xff]
        %v373 = vld [vmem:[%s2] sm:$0xff]
        %v374 = vld [vmem:[%s2 + $0x8] sm:$0xff]
        %v375 = vld [vmem:[%s2 + $0x10] sm:$0xff]
        %v376 = vld [vmem:[%s2 + $0x18] sm:$0xff]
        %v377 = vld [vmem:[%s2 + $0x20] sm:$0xff]
        %v378 = vld [vmem:[%s2 + $0x28] sm:$0xff]
        %v379 = vld [vmem:[%s2 + $0x30] sm:$0xff]
        %v380 = vld [vmem:[%s2 + $0x38] sm:$0xff]
        %v381 = vld [vmem:[%s2 + $0x40] sm:$0xff]
        %v382 = vld [vmem:[%s2 + $0x48] sm:$0xff]
        %v383 = vld [vmem:[%s2 + $0x50] sm:$0xff]
        %v384 = vld [vmem:[%s2 + $0x58] sm:$0xff]
        %v385 = vld [vmem:[%s2 + $0x60] sm:$0xff]
        %v386 = vld [vmem:[%s2 + $0x68] sm:$0xff]
        %v387 = vld [vmem:[%s2 + $0x70] sm:$0xff]
        %v388 = vld [vmem:[%s2 + $0x78] sm:$0xff]
        %390 = vset.pattern.permute.xlu0 0
        %391 = vperm.xlu0 %390, %v373
        %v392 = vpop.permute.xlu0 %391
        %395 = vset.pattern.permute.xlu0 0
        %396 = vperm.xlu0 %395, %v374
        %v397 = vpop.permute.xlu0 %396
        %400 = vset.pattern.permute.xlu0 0
        %401 = vperm.xlu0 %400, %v375
        %v402 = vpop.permute.xlu0 %401
        %405 = vset.pattern.permute.xlu0 0
        %406 = vperm.xlu0 %405, %v376
        %v407 = vpop.permute.xlu0 %406
        %410 = vset.pattern.permute.xlu0 0
        %411 = vperm.xlu0 %410, %v377
        %v412 = vpop.permute.xlu0 %411
        %415 = vset.pattern.permute.xlu0 0
        %416 = vperm.xlu0 %415, %v378
        %v417 = vpop.permute.xlu0 %416
        %420 = vset.pattern.permute.xlu0 0
        %421 = vperm.xlu0 %420, %v379
        %v422 = vpop.permute.xlu0 %421
        %425 = vset.pattern.permute.xlu0 0
        %426 = vperm.xlu0 %425, %v380
        %v427 = vpop.permute.xlu0 %426
        %430 = vset.pattern.permute.xlu0 0
        %431 = vperm.xlu0 %430, %v381
        %v432 = vpop.permute.xlu0 %431
        %435 = vset.pattern.permute.xlu0 0
        %436 = vperm.xlu0 %435, %v382
        %v437 = vpop.permute.xlu0 %436
        %440 = vset.pattern.permute.xlu0 0
        %441 = vperm.xlu0 %440, %v383
        %v442 = vpop.permute.xlu0 %441
        %445 = vset.pattern.permute.xlu0 0
        %446 = vperm.xlu0 %445, %v384
        %v447 = vpop.permute.xlu0 %446
        %450 = vset.pattern.permute.xlu0 0
        %451 = vperm.xlu0 %450, %v385
        %v452 = vpop.permute.xlu0 %451
        %455 = vset.pattern.permute.xlu0 0
        %456 = vperm.xlu0 %455, %v386
        %v457 = vpop.permute.xlu0 %456
        %460 = vset.pattern.permute.xlu0 0
        %461 = vperm.xlu0 %460, %v387
        %v462 = vpop.permute.xlu0 %461
        %465 = vset.pattern.permute.xlu0 0
        %466 = vperm.xlu0 %465, %v388
        %v467 = vpop.permute.xlu0 %466
        %vm469 = vcmask 64512
        %v471 = vsel %vm469, %v357, 0
        %v474 = vsel %vm469, %v358, 0
        %v477 = vsel %vm469, %v359, 0
        %v480 = vsel %vm469, %v360, 0
        %v483 = vsel %vm469, %v361, 0
        %v486 = vsel %vm469, %v362, 0
        %v489 = vsel %vm469, %v363, 0
        %v492 = vsel %vm469, %v364, 0
        %v495 = vsel %vm469, %v365, 0
        %v498 = vsel %vm469, %v366, 0
        %v501 = vsel %vm469, %v367, 0
        %v504 = vsel %vm469, %v368, 0
        %v507 = vsel %vm469, %v369, 0
        %v510 = vsel %vm469, %v370, 0
        %v513 = vsel %vm469, %v371, 0
        %v516 = vsel %vm469, %v372, 0
        %518 = vmatpush.msra.mxu0 0.0
        %519 = vmatpush.msra.mxu0 0.0
        %520 = vmatpush.msra.mxu0 0.0
        %521 = vmatpush.msra.mxu0 0.0
        %522 = vmatpush.msra.mxu0 0.0
        %523 = vmatpush.msra.mxu0 0.0
        %524 = vmatpush.msra.mxu0 0.0
        %525 = vmatpush.msra.mxu0 0.0
        %526 = vmatpush.msra.mxu0 0.0
        %527 = vmatpush.msra.mxu0 0.0
        %528 = vmatpush.msra.mxu0 0.0
        %529 = vmatpush.msra.mxu0 0.0
        %530 = vmatpush.msra.mxu0 0.0
        %531 = vmatpush.msra.mxu0 0.0
        %532 = vmatpush.msra.mxu0 0.0
        %533 = vmatpush.msra.mxu0 %v356
        %534 = vmatmul.f32.gmra.mxu0 %v471
        %v535 = vpop.f32.mrf.mxu0
        %v536 = vadd.f32 %v392, %v535
        %537 = vmatmul.f32.gmra.mxu0 %v474
        %v538 = vpop.f32.mrf.mxu0
        %v539 = vadd.f32 %v397, %v538
        %540 = vmatmul.f32.gmra.mxu0 %v477
        %v541 = vpop.f32.mrf.mxu0
        %v542 = vadd.f32 %v402, %v541
        %543 = vmatmul.f32.gmra.mxu0 %v480
        %v544 = vpop.f32.mrf.mxu0
        %v545 = vadd.f32 %v407, %v544
        %546 = vmatmul.f32.gmra.mxu0 %v483
        %v547 = vpop.f32.mrf.mxu0
        %v548 = vadd.f32 %v412, %v547
        %549 = vmatmul.f32.gmra.mxu0 %v486
        %v550 = vpop.f32.mrf.mxu0
        %v551 = vadd.f32 %v417, %v550
        %552 = vmatmul.f32.gmra.mxu0 %v489
        %v553 = vpop.f32.mrf.mxu0
        %v554 = vadd.f32 %v422, %v553
        %555 = vmatmul.f32.gmra.mxu0 %v492
        %v556 = vpop.f32.mrf.mxu0
        %v557 = vadd.f32 %v427, %v556
        %558 = vmatmul.f32.gmra.mxu0 %v495
        %v559 = vpop.f32.mrf.mxu0
        %v560 = vadd.f32 %v432, %v559
        %561 = vmatmul.f32.gmra.mxu0 %v498
        %v562 = vpop.f32.mrf.mxu0
        %v563 = vadd.f32 %v437, %v562
        %564 = vmatmul.f32.gmra.mxu0 %v501
        %v565 = vpop.f32.mrf.mxu0
        %v566 = vadd.f32 %v442, %v565
        %567 = vmatmul.f32.gmra.mxu0 %v504
        %v568 = vpop.f32.mrf.mxu0
        %v569 = vadd.f32 %v447, %v568
        %570 = vmatmul.f32.gmra.mxu0 %v507
        %v571 = vpop.f32.mrf.mxu0
        %v572 = vadd.f32 %v452, %v571
        %573 = vmatmul.f32.gmra.mxu0 %v510
        %v574 = vpop.f32.mrf.mxu0
        %v575 = vadd.f32 %v457, %v574
        %576 = vmatmul.f32.gmra.mxu0 %v513
        %v577 = vpop.f32.mrf.mxu0
        %v578 = vadd.f32 %v462, %v577
        %579 = vmatmul.f32.gmra.mxu0 %v516
        %v580 = vpop.f32.mrf.mxu0
        %v581 = vadd.f32 %v467, %v580
        %582 = vdwg.mxu0
        %v583 = vmax.f32 %v536, 0.0
        %v584 = vmax.f32 %v539, 0.0
        %v585 = vmax.f32 %v542, 0.0
        %v586 = vmax.f32 %v545, 0.0
        %v587 = vmax.f32 %v548, 0.0
        %v588 = vmax.f32 %v551, 0.0
        %v589 = vmax.f32 %v554, 0.0
        %v590 = vmax.f32 %v557, 0.0
        %v591 = vmax.f32 %v560, 0.0
        %v592 = vmax.f32 %v563, 0.0
        %v593 = vmax.f32 %v566, 0.0
        %v594 = vmax.f32 %v569, 0.0
        %v595 = vmax.f32 %v572, 0.0
        %v596 = vmax.f32 %v575, 0.0
        %v597 = vmax.f32 %v578, 0.0
        %v598 = vmax.f32 %v581, 0.0
        %v599 = vld [vmem:[%s3] sm:$0xff]
        %v600 = vld [vmem:[%s3 + $0x8] sm:$0xff]
        %v601 = vld [vmem:[%s3 + $0x10] sm:$0xff]
        %v602 = vld [vmem:[%s3 + $0x18] sm:$0xff]
        %v603 = vld [vmem:[%s3 + $0x20] sm:$0xff]
        %v604 = vld [vmem:[%s3 + $0x28] sm:$0xff]
        %v605 = vld [vmem:[%s3 + $0x30] sm:$0xff]
        %v606 = vld [vmem:[%s3 + $0x38] sm:$0xff]
        %v607 = vld [vmem:[%s3 + $0x40] sm:$0xff]
        %v608 = vld [vmem:[%s3 + $0x48] sm:$0xff]
        %v609 = vld [vmem:[%s3 + $0x50] sm:$0xff]
        %v610 = vld [vmem:[%s3 + $0x58] sm:$0xff]
        %v611 = vld [vmem:[%s3 + $0x60] sm:$0xff]
        %v612 = vld [vmem:[%s3 + $0x68] sm:$0xff]
        %v613 = vld [vmem:[%s3 + $0x70] sm:$0xff]
        %v614 = vld [vmem:[%s3 + $0x78] sm:$0xff]
        %v615 = vld [vmem:[%s5] sm:$0xff]
        %v616 = vld [vmem:[%s5 + $0x8] sm:$0xff]
        %v617 = vld [vmem:[%s5 + $0x10] sm:$0xff]
        %v618 = vld [vmem:[%s5 + $0x18] sm:$0xff]
        %v619 = vld [vmem:[%s5 + $0x20] sm:$0xff]
        %v620 = vld [vmem:[%s5 + $0x28] sm:$0xff]
        %v621 = vld [vmem:[%s5 + $0x30] sm:$0xff]
        %v622 = vld [vmem:[%s5 + $0x38] sm:$0xff]
        %v623 = vld [vmem:[%s5 + $0x40] sm:$0xff]
        %v624 = vld [vmem:[%s5 + $0x48] sm:$0xff]
        %v625 = vld [vmem:[%s5 + $0x50] sm:$0xff]
        %v626 = vld [vmem:[%s5 + $0x58] sm:$0xff]
        %v627 = vld [vmem:[%s5 + $0x60] sm:$0xff]
        %v628 = vld [vmem:[%s5 + $0x68] sm:$0xff]
        %v629 = vld [vmem:[%s5 + $0x70] sm:$0xff]
        %v630 = vld [vmem:[%s5 + $0x78] sm:$0xff]
        %632 = vset.pattern.permute.xlu0 0
        %633 = vperm.xlu0 %632, %v615
        %v634 = vpop.permute.xlu0 %633
        %637 = vset.pattern.permute.xlu0 0
        %638 = vperm.xlu0 %637, %v616
        %v639 = vpop.permute.xlu0 %638
        %642 = vset.pattern.permute.xlu0 0
        %643 = vperm.xlu0 %642, %v617
        %v644 = vpop.permute.xlu0 %643
        %647 = vset.pattern.permute.xlu0 0
        %648 = vperm.xlu0 %647, %v618
        %v649 = vpop.permute.xlu0 %648
        %652 = vset.pattern.permute.xlu0 0
        %653 = vperm.xlu0 %652, %v619
        %v654 = vpop.permute.xlu0 %653
        %657 = vset.pattern.permute.xlu0 0
        %658 = vperm.xlu0 %657, %v620
        %v659 = vpop.permute.xlu0 %658
        %662 = vset.pattern.permute.xlu0 0
        %663 = vperm.xlu0 %662, %v621
        %v664 = vpop.permute.xlu0 %663
        %667 = vset.pattern.permute.xlu0 0
        %668 = vperm.xlu0 %667, %v622
        %v669 = vpop.permute.xlu0 %668
        %672 = vset.pattern.permute.xlu0 0
        %673 = vperm.xlu0 %672, %v623
        %v674 = vpop.permute.xlu0 %673
        %677 = vset.pattern.permute.xlu0 0
        %678 = vperm.xlu0 %677, %v624
        %v679 = vpop.permute.xlu0 %678
        %682 = vset.pattern.permute.xlu0 0
        %683 = vperm.xlu0 %682, %v625
        %v684 = vpop.permute.xlu0 %683
        %687 = vset.pattern.permute.xlu0 0
        %688 = vperm.xlu0 %687, %v626
        %v689 = vpop.permute.xlu0 %688
        %692 = vset.pattern.permute.xlu0 0
        %693 = vperm.xlu0 %692, %v627
        %v694 = vpop.permute.xlu0 %693
        %697 = vset.pattern.permute.xlu0 0
        %698 = vperm.xlu0 %697, %v628
        %v699 = vpop.permute.xlu0 %698
        %702 = vset.pattern.permute.xlu0 0
        %703 = vperm.xlu0 %702, %v629
        %v704 = vpop.permute.xlu0 %703
        %707 = vset.pattern.permute.xlu0 0
        %708 = vperm.xlu0 %707, %v630
        %v709 = vpop.permute.xlu0 %708
        %711 = vmatpush.msra.mxu0 %v598
        %712 = vmatpush.msra.mxu0 %v597
        %713 = vmatpush.msra.mxu0 %v596
        %714 = vmatpush.msra.mxu0 %v595
        %715 = vmatpush.msra.mxu0 %v594
        %716 = vmatpush.msra.mxu0 %v593
        %717 = vmatpush.msra.mxu0 %v592
        %718 = vmatpush.msra.mxu0 %v591
        %719 = vmatpush.msra.mxu0 %v590
        %720 = vmatpush.msra.mxu0 %v589
        %721 = vmatpush.msra.mxu0 %v588
        %722 = vmatpush.msra.mxu0 %v587
        %723 = vmatpush.msra.mxu0 %v586
        %724 = vmatpush.msra.mxu0 %v585
        %725 = vmatpush.msra.mxu0 %v584
        %726 = vmatpush.msra.mxu0 %v583
        %727 = vmatmul.f32.gmra.mxu0 %v599
        %v728 = vpop.f32.mrf.mxu0
        %v729 = vadd.f32 %v634, %v728
        %730 = vmatmul.f32.gmra.mxu0 %v600
        %v731 = vpop.f32.mrf.mxu0
        %v732 = vadd.f32 %v639, %v731
        %733 = vmatmul.f32.gmra.mxu0 %v601
        %v734 = vpop.f32.mrf.mxu0
        %v735 = vadd.f32 %v644, %v734
        %736 = vmatmul.f32.gmra.mxu0 %v602
        %v737 = vpop.f32.mrf.mxu0
        %v738 = vadd.f32 %v649, %v737
        %739 = vmatmul.f32.gmra.mxu0 %v603
        %v740 = vpop.f32.mrf.mxu0
        %v741 = vadd.f32 %v654, %v740
        %742 = vmatmul.f32.gmra.mxu0 %v604
        %v743 = vpop.f32.mrf.mxu0
        %v744 = vadd.f32 %v659, %v743
        %745 = vmatmul.f32.gmra.mxu0 %v605
        %v746 = vpop.f32.mrf.mxu0
        %v747 = vadd.f32 %v664, %v746
        %748 = vmatmul.f32.gmra.mxu0 %v606
        %v749 = vpop.f32.mrf.mxu0
        %v750 = vadd.f32 %v669, %v749
        %751 = vmatmul.f32.gmra.mxu0 %v607
        %v752 = vpop.f32.mrf.mxu0
        %v753 = vadd.f32 %v674, %v752
        %754 = vmatmul.f32.gmra.mxu0 %v608
        %v755 = vpop.f32.mrf.mxu0
        %v756 = vadd.f32 %v679, %v755
        %757 = vmatmul.f32.gmra.mxu0 %v609
        %v758 = vpop.f32.mrf.mxu0
        %v759 = vadd.f32 %v684, %v758
        %760 = vmatmul.f32.gmra.mxu0 %v610
        %v761 = vpop.f32.mrf.mxu0
        %v762 = vadd.f32 %v689, %v761
        %763 = vmatmul.f32.gmra.mxu0 %v611
        %v764 = vpop.f32.mrf.mxu0
        %v765 = vadd.f32 %v694, %v764
        %766 = vmatmul.f32.gmra.mxu0 %v612
        %v767 = vpop.f32.mrf.mxu0
        %v768 = vadd.f32 %v699, %v767
        %769 = vmatmul.f32.gmra.mxu0 %v613
        %v770 = vpop.f32.mrf.mxu0
        %v771 = vadd.f32 %v704, %v770
        %772 = vmatmul.f32.gmra.mxu0 %v614
        %v773 = vpop.f32.mrf.mxu0
        %v774 = vadd.f32 %v709, %v773
        %775 = vdwg.mxu0
        %v776 = vmax.f32 %v729, 0.0
        %v777 = vmax.f32 %v732, 0.0
        %v778 = vmax.f32 %v735, 0.0
        %v779 = vmax.f32 %v738, 0.0
        %v780 = vmax.f32 %v741, 0.0
        %v781 = vmax.f32 %v744, 0.0
        %v782 = vmax.f32 %v747, 0.0
        %v783 = vmax.f32 %v750, 0.0
        %v784 = vmax.f32 %v753, 0.0
        %v785 = vmax.f32 %v756, 0.0
        %v786 = vmax.f32 %v759, 0.0
        %v787 = vmax.f32 %v762, 0.0
        %v788 = vmax.f32 %v765, 0.0
        %v789 = vmax.f32 %v768, 0.0
        %v790 = vmax.f32 %v771, 0.0
        %v791 = vmax.f32 %v774, 0.0
        %v792 = vld [vmem:[%s7] sm:$0xff]
        %v793 = vld [vmem:[%s7 + $0x8] sm:$0xff]
        %v794 = vld [vmem:[%s7 + $0x10] sm:$0xff]
        %v795 = vld [vmem:[%s7 + $0x18] sm:$0xff]
        %v796 = vld [vmem:[%s7 + $0x20] sm:$0xff]
        %v797 = vld [vmem:[%s7 + $0x28] sm:$0xff]
        %v798 = vld [vmem:[%s7 + $0x30] sm:$0xff]
        %v799 = vld [vmem:[%s7 + $0x38] sm:$0xff]
        %v800 = vld [vmem:[%s7 + $0x40] sm:$0xff]
        %v801 = vld [vmem:[%s7 + $0x48] sm:$0xff]
        %v802 = vld [vmem:[%s7 + $0x50] sm:$0xff]
        %v803 = vld [vmem:[%s7 + $0x58] sm:$0xff]
        %v804 = vld [vmem:[%s7 + $0x60] sm:$0xff]
        %v805 = vld [vmem:[%s7 + $0x68] sm:$0xff]
        %v806 = vld [vmem:[%s7 + $0x70] sm:$0xff]
        %v807 = vld [vmem:[%s7 + $0x78] sm:$0xff]
        %809 = vset.pattern.permute.xlu0 0
        %810 = vperm.xlu0 %809, %v792
        %v811 = vpop.permute.xlu0 %810
        %814 = vset.pattern.permute.xlu0 0
        %815 = vperm.xlu0 %814, %v793
        %v816 = vpop.permute.xlu0 %815
        %819 = vset.pattern.permute.xlu0 0
        %820 = vperm.xlu0 %819, %v794
        %v821 = vpop.permute.xlu0 %820
        %824 = vset.pattern.permute.xlu0 0
        %825 = vperm.xlu0 %824, %v795
        %v826 = vpop.permute.xlu0 %825
        %829 = vset.pattern.permute.xlu0 0
        %830 = vperm.xlu0 %829, %v796
        %v831 = vpop.permute.xlu0 %830
        %834 = vset.pattern.permute.xlu0 0
        %835 = vperm.xlu0 %834, %v797
        %v836 = vpop.permute.xlu0 %835
        %839 = vset.pattern.permute.xlu0 0
        %840 = vperm.xlu0 %839, %v798
        %v841 = vpop.permute.xlu0 %840
        %844 = vset.pattern.permute.xlu0 0
        %845 = vperm.xlu0 %844, %v799
        %v846 = vpop.permute.xlu0 %845
        %849 = vset.pattern.permute.xlu0 0
        %850 = vperm.xlu0 %849, %v800
        %v851 = vpop.permute.xlu0 %850
        %854 = vset.pattern.permute.xlu0 0
        %855 = vperm.xlu0 %854, %v801
        %v856 = vpop.permute.xlu0 %855
        %859 = vset.pattern.permute.xlu0 0
        %860 = vperm.xlu0 %859, %v802
        %v861 = vpop.permute.xlu0 %860
        %864 = vset.pattern.permute.xlu0 0
        %865 = vperm.xlu0 %864, %v803
        %v866 = vpop.permute.xlu0 %865
        %869 = vset.pattern.permute.xlu0 0
        %870 = vperm.xlu0 %869, %v804
        %v871 = vpop.permute.xlu0 %870
        %874 = vset.pattern.permute.xlu0 0
        %875 = vperm.xlu0 %874, %v805
        %v876 = vpop.permute.xlu0 %875
        %879 = vset.pattern.permute.xlu0 0
        %880 = vperm.xlu0 %879, %v806
        %v881 = vpop.permute.xlu0 %880
        %884 = vset.pattern.permute.xlu0 0
        %885 = vperm.xlu0 %884, %v807
        %v886 = vpop.permute.xlu0 %885
        %v888 = vmul.f32 %v776, %v811
        %v889 = vmul.f32 %v777, %v816
        %v890 = vmul.f32 %v778, %v821
        %v891 = vmul.f32 %v779, %v826
        %v892 = vmul.f32 %v780, %v831
        %v893 = vmul.f32 %v781, %v836
        %v894 = vmul.f32 %v782, %v841
        %v895 = vmul.f32 %v783, %v846
        %v896 = vmul.f32 %v784, %v851
        %v897 = vmul.f32 %v785, %v856
        %v898 = vmul.f32 %v786, %v861
        %v899 = vmul.f32 %v787, %v866
        %v900 = vmul.f32 %v788, %v871
        %v901 = vmul.f32 %v789, %v876
        %v902 = vmul.f32 %v790, %v881
        %v903 = vmul.f32 %v791, %v886
        %v904 = vadd.f32 %v888, %v889
        %v905 = vadd.f32 %v904, %v890
        %v906 = vadd.f32 %v905, %v891
        %v907 = vadd.f32 %v906, %v892
        %v908 = vadd.f32 %v907, %v893
        %v909 = vadd.f32 %v908, %v894
        %v910 = vadd.f32 %v909, %v895
        %v911 = vadd.f32 %v910, %v896
        %v912 = vadd.f32 %v911, %v897
        %v913 = vadd.f32 %v912, %v898
        %v914 = vadd.f32 %v913, %v899
        %v915 = vadd.f32 %v914, %v900
        %v916 = vadd.f32 %v915, %v901
        %v917 = vadd.f32 %v916, %v902
        %v918 = vadd.f32 %v917, %v903
        %v919 = vrot.slane %v918, 4
        %v920 = vadd.f32 %v918, %v919
        %v921 = vrot.slane %v920, 2
        %v922 = vadd.f32 %v920, %v921
        %v923 = vrot.slane %v922, 1
        %v924 = vadd.f32 %v922, %v923
        %v925 = vld [vmem:[%s4] sm:$0xff]
        %v926 = vld [vmem:[%s4 + $0x8] sm:$0xff]
        %v927 = vld [vmem:[%s4 + $0x10] sm:$0xff]
        %v928 = vld [vmem:[%s4 + $0x18] sm:$0xff]
        %v929 = vld [vmem:[%s4 + $0x20] sm:$0xff]
        %v930 = vld [vmem:[%s4 + $0x28] sm:$0xff]
        %v931 = vld [vmem:[%s4 + $0x30] sm:$0xff]
        %v932 = vld [vmem:[%s4 + $0x38] sm:$0xff]
        %v933 = vld [vmem:[%s4 + $0x40] sm:$0xff]
        %v934 = vld [vmem:[%s4 + $0x48] sm:$0xff]
        %v935 = vld [vmem:[%s4 + $0x50] sm:$0xff]
        %v936 = vld [vmem:[%s4 + $0x58] sm:$0xff]
        %v937 = vld [vmem:[%s4 + $0x60] sm:$0xff]
        %v938 = vld [vmem:[%s4 + $0x68] sm:$0xff]
        %v939 = vld [vmem:[%s4 + $0x70] sm:$0xff]
        %v940 = vld [vmem:[%s4 + $0x78] sm:$0xff]
        %v941 = vld [vmem:[%s6] sm:$0xff]
        %v942 = vld [vmem:[%s6 + $0x8] sm:$0xff]
        %v943 = vld [vmem:[%s6 + $0x10] sm:$0xff]
        %v944 = vld [vmem:[%s6 + $0x18] sm:$0xff]
        %v945 = vld [vmem:[%s6 + $0x20] sm:$0xff]
        %v946 = vld [vmem:[%s6 + $0x28] sm:$0xff]
        %v947 = vld [vmem:[%s6 + $0x30] sm:$0xff]
        %v948 = vld [vmem:[%s6 + $0x38] sm:$0xff]
        %v949 = vld [vmem:[%s6 + $0x40] sm:$0xff]
        %v950 = vld [vmem:[%s6 + $0x48] sm:$0xff]
        %v951 = vld [vmem:[%s6 + $0x50] sm:$0xff]
        %v952 = vld [vmem:[%s6 + $0x58] sm:$0xff]
        %v953 = vld [vmem:[%s6 + $0x60] sm:$0xff]
        %v954 = vld [vmem:[%s6 + $0x68] sm:$0xff]
        %v955 = vld [vmem:[%s6 + $0x70] sm:$0xff]
        %v956 = vld [vmem:[%s6 + $0x78] sm:$0xff]
        %958 = vset.pattern.permute.xlu0 0
        %959 = vperm.xlu0 %958, %v941
        %v960 = vpop.permute.xlu0 %959
        %963 = vset.pattern.permute.xlu0 0
        %964 = vperm.xlu0 %963, %v942
        %v965 = vpop.permute.xlu0 %964
        %968 = vset.pattern.permute.xlu0 0
        %969 = vperm.xlu0 %968, %v943
        %v970 = vpop.permute.xlu0 %969
        %973 = vset.pattern.permute.xlu0 0
        %974 = vperm.xlu0 %973, %v944
        %v975 = vpop.permute.xlu0 %974
        %978 = vset.pattern.permute.xlu0 0
        %979 = vperm.xlu0 %978, %v945
        %v980 = vpop.permute.xlu0 %979
        %983 = vset.pattern.permute.xlu0 0
        %984 = vperm.xlu0 %983, %v946
        %v985 = vpop.permute.xlu0 %984
        %988 = vset.pattern.permute.xlu0 0
        %989 = vperm.xlu0 %988, %v947
        %v990 = vpop.permute.xlu0 %989
        %993 = vset.pattern.permute.xlu0 0
        %994 = vperm.xlu0 %993, %v948
        %v995 = vpop.permute.xlu0 %994
        %998 = vset.pattern.permute.xlu0 0
        %999 = vperm.xlu0 %998, %v949
        %v1000 = vpop.permute.xlu0 %999
        %1003 = vset.pattern.permute.xlu0 0
        %1004 = vperm.xlu0 %1003, %v950
        %v1005 = vpop.permute.xlu0 %1004
        %1008 = vset.pattern.permute.xlu0 0
        %1009 = vperm.xlu0 %1008, %v951
        %v1010 = vpop.permute.xlu0 %1009
        %1013 = vset.pattern.permute.xlu0 0
        %1014 = vperm.xlu0 %1013, %v952
        %v1015 = vpop.permute.xlu0 %1014
        %1018 = vset.pattern.permute.xlu0 0
        %1019 = vperm.xlu0 %1018, %v953
        %v1020 = vpop.permute.xlu0 %1019
        %1023 = vset.pattern.permute.xlu0 0
        %1024 = vperm.xlu0 %1023, %v954
        %v1025 = vpop.permute.xlu0 %1024
        %1028 = vset.pattern.permute.xlu0 0
        %1029 = vperm.xlu0 %1028, %v955
        %v1030 = vpop.permute.xlu0 %1029
        %1033 = vset.pattern.permute.xlu0 0
        %1034 = vperm.xlu0 %1033, %v956
        %v1035 = vpop.permute.xlu0 %1034
        %1037 = vmatpush.msra.mxu0 %v598
        %1038 = vmatpush.msra.mxu0 %v597
        %1039 = vmatpush.msra.mxu0 %v596
        %1040 = vmatpush.msra.mxu0 %v595
        %1041 = vmatpush.msra.mxu0 %v594
        %1042 = vmatpush.msra.mxu0 %v593
        %1043 = vmatpush.msra.mxu0 %v592
        %1044 = vmatpush.msra.mxu0 %v591
        %1045 = vmatpush.msra.mxu0 %v590
        %1046 = vmatpush.msra.mxu0 %v589
        %1047 = vmatpush.msra.mxu0 %v588
        %1048 = vmatpush.msra.mxu0 %v587
        %1049 = vmatpush.msra.mxu0 %v586
        %1050 = vmatpush.msra.mxu0 %v585
        %1051 = vmatpush.msra.mxu0 %v584
        %1052 = vmatpush.msra.mxu0 %v583
        %1053 = vmatmul.f32.gmra.mxu0 %v925
        %v1054 = vpop.f32.mrf.mxu0
        %v1055 = vadd.f32 %v960, %v1054
        %1056 = vmatmul.f32.gmra.mxu0 %v926
        %v1057 = vpop.f32.mrf.mxu0
        %v1058 = vadd.f32 %v965, %v1057
        %1059 = vmatmul.f32.gmra.mxu0 %v927
        %v1060 = vpop.f32.mrf.mxu0
        %v1061 = vadd.f32 %v970, %v1060
        %1062 = vmatmul.f32.gmra.mxu0 %v928
        %v1063 = vpop.f32.mrf.mxu0
        %v1064 = vadd.f32 %v975, %v1063
        %1065 = vmatmul.f32.gmra.mxu0 %v929
        %v1066 = vpop.f32.mrf.mxu0
        %v1067 = vadd.f32 %v980, %v1066
        %1068 = vmatmul.f32.gmra.mxu0 %v930
        %v1069 = vpop.f32.mrf.mxu0
        %v1070 = vadd.f32 %v985, %v1069
        %1071 = vmatmul.f32.gmra.mxu0 %v931
        %v1072 = vpop.f32.mrf.mxu0
        %v1073 = vadd.f32 %v990, %v1072
        %1074 = vmatmul.f32.gmra.mxu0 %v932
        %v1075 = vpop.f32.mrf.mxu0
        %v1076 = vadd.f32 %v995, %v1075
        %1077 = vmatmul.f32.gmra.mxu0 %v933
        %v1078 = vpop.f32.mrf.mxu0
        %v1079 = vadd.f32 %v1000, %v1078
        %1080 = vmatmul.f32.gmra.mxu0 %v934
        %v1081 = vpop.f32.mrf.mxu0
        %v1082 = vadd.f32 %v1005, %v1081
        %1083 = vmatmul.f32.gmra.mxu0 %v935
        %v1084 = vpop.f32.mrf.mxu0
        %v1085 = vadd.f32 %v1010, %v1084
        %1086 = vmatmul.f32.gmra.mxu0 %v936
        %v1087 = vpop.f32.mrf.mxu0
        %v1088 = vadd.f32 %v1015, %v1087
        %1089 = vmatmul.f32.gmra.mxu0 %v937
        %v1090 = vpop.f32.mrf.mxu0
        %v1091 = vadd.f32 %v1020, %v1090
        %1092 = vmatmul.f32.gmra.mxu0 %v938
        %v1093 = vpop.f32.mrf.mxu0
        %v1094 = vadd.f32 %v1025, %v1093
        %1095 = vmatmul.f32.gmra.mxu0 %v939
        %v1096 = vpop.f32.mrf.mxu0
        %v1097 = vadd.f32 %v1030, %v1096
        %1098 = vmatmul.f32.gmra.mxu0 %v940
        %v1099 = vpop.f32.mrf.mxu0
        %v1100 = vadd.f32 %v1035, %v1099
        %1101 = vdwg.mxu0
        %v1102 = vmax.f32 %v1055, 0.0
        %v1103 = vmax.f32 %v1058, 0.0
        %v1104 = vmax.f32 %v1061, 0.0
        %v1105 = vmax.f32 %v1064, 0.0
        %v1106 = vmax.f32 %v1067, 0.0
        %v1107 = vmax.f32 %v1070, 0.0
        %v1108 = vmax.f32 %v1073, 0.0
        %v1109 = vmax.f32 %v1076, 0.0
        %v1110 = vmax.f32 %v1079, 0.0
        %v1111 = vmax.f32 %v1082, 0.0
        %v1112 = vmax.f32 %v1085, 0.0
        %v1113 = vmax.f32 %v1088, 0.0
        %v1114 = vmax.f32 %v1091, 0.0
        %v1115 = vmax.f32 %v1094, 0.0
        %v1116 = vmax.f32 %v1097, 0.0
        %v1117 = vmax.f32 %v1100, 0.0
        %v1118 = vld [vmem:[%s8] sm:$0xff]
        %v1119 = vld [vmem:[%s8 + $0x8] sm:$0xff]
        %v1120 = vld [vmem:[%s8 + $0x10] sm:$0xff]
        %v1121 = vld [vmem:[%s8 + $0x18] sm:$0xff]
        %v1122 = vld [vmem:[%s8 + $0x20] sm:$0xff]
        %v1123 = vld [vmem:[%s8 + $0x28] sm:$0xff]
        %v1124 = vld [vmem:[%s8 + $0x30] sm:$0xff]
        %v1125 = vld [vmem:[%s8 + $0x38] sm:$0xff]
        %v1126 = vld [vmem:[%s8 + $0x40] sm:$0xff]
        %v1127 = vld [vmem:[%s8 + $0x48] sm:$0xff]
        %v1128 = vld [vmem:[%s8 + $0x50] sm:$0xff]
        %v1129 = vld [vmem:[%s8 + $0x58] sm:$0xff]
        %v1130 = vld [vmem:[%s8 + $0x60] sm:$0xff]
        %v1131 = vld [vmem:[%s8 + $0x68] sm:$0xff]
        %v1132 = vld [vmem:[%s8 + $0x70] sm:$0xff]
        %v1133 = vld [vmem:[%s8 + $0x78] sm:$0xff]
        %1135 = vset.pattern.permute.xlu0 0
        %1136 = vperm.xlu0 %1135, %v1118
        %v1137 = vpop.permute.xlu0 %1136
        %1140 = vset.pattern.permute.xlu0 0
        %1141 = vperm.xlu0 %1140, %v1119
        %v1142 = vpop.permute.xlu0 %1141
        %1145 = vset.pattern.permute.xlu0 0
        %1146 = vperm.xlu0 %1145, %v1120
        %v1147 = vpop.permute.xlu0 %1146
        %1150 = vset.pattern.permute.xlu0 0
        %1151 = vperm.xlu0 %1150, %v1121
        %v1152 = vpop.permute.xlu0 %1151
        %1155 = vset.pattern.permute.xlu0 0
        %1156 = vperm.xlu0 %1155, %v1122
        %v1157 = vpop.permute.xlu0 %1156
        %1160 = vset.pattern.permute.xlu0 0
        %1161 = vperm.xlu0 %1160, %v1123
        %v1162 = vpop.permute.xlu0 %1161
        %1165 = vset.pattern.permute.xlu0 0
        %1166 = vperm.xlu0 %1165, %v1124
        %v1167 = vpop.permute.xlu0 %1166
        %1170 = vset.pattern.permute.xlu0 0
        %1171 = vperm.xlu0 %1170, %v1125
        %v1172 = vpop.permute.xlu0 %1171
        %1175 = vset.pattern.permute.xlu0 0
        %1176 = vperm.xlu0 %1175, %v1126
        %v1177 = vpop.permute.xlu0 %1176
        %1180 = vset.pattern.permute.xlu0 0
        %1181 = vperm.xlu0 %1180, %v1127
        %v1182 = vpop.permute.xlu0 %1181
        %1185 = vset.pattern.permute.xlu0 0
        %1186 = vperm.xlu0 %1185, %v1128
        %v1187 = vpop.permute.xlu0 %1186
        %1190 = vset.pattern.permute.xlu0 0
        %1191 = vperm.xlu0 %1190, %v1129
        %v1192 = vpop.permute.xlu0 %1191
        %1195 = vset.pattern.permute.xlu0 0
        %1196 = vperm.xlu0 %1195, %v1130
        %v1197 = vpop.permute.xlu0 %1196
        %1200 = vset.pattern.permute.xlu0 0
        %1201 = vperm.xlu0 %1200, %v1131
        %v1202 = vpop.permute.xlu0 %1201
        %1205 = vset.pattern.permute.xlu0 0
        %1206 = vperm.xlu0 %1205, %v1132
        %v1207 = vpop.permute.xlu0 %1206
        %1210 = vset.pattern.permute.xlu0 0
        %1211 = vperm.xlu0 %1210, %v1133
        %v1212 = vpop.permute.xlu0 %1211
        %v1214 = vmul.f32 %v1102, %v1137
        %v1215 = vmul.f32 %v1103, %v1142
        %v1216 = vmul.f32 %v1104, %v1147
        %v1217 = vmul.f32 %v1105, %v1152
        %v1218 = vmul.f32 %v1106, %v1157
        %v1219 = vmul.f32 %v1107, %v1162
        %v1220 = vmul.f32 %v1108, %v1167
        %v1221 = vmul.f32 %v1109, %v1172
        %v1222 = vmul.f32 %v1110, %v1177
        %v1223 = vmul.f32 %v1111, %v1182
        %v1224 = vmul.f32 %v1112, %v1187
        %v1225 = vmul.f32 %v1113, %v1192
        %v1226 = vmul.f32 %v1114, %v1197
        %v1227 = vmul.f32 %v1115, %v1202
        %v1228 = vmul.f32 %v1116, %v1207
        %v1229 = vmul.f32 %v1117, %v1212
        %v1230 = vadd.f32 %v1214, %v1215
        %v1231 = vadd.f32 %v1230, %v1216
        %v1232 = vadd.f32 %v1231, %v1217
        %v1233 = vadd.f32 %v1232, %v1218
        %v1234 = vadd.f32 %v1233, %v1219
        %v1235 = vadd.f32 %v1234, %v1220
        %v1236 = vadd.f32 %v1235, %v1221
        %v1237 = vadd.f32 %v1236, %v1222
        %v1238 = vadd.f32 %v1237, %v1223
        %v1239 = vadd.f32 %v1238, %v1224
        %v1240 = vadd.f32 %v1239, %v1225
        %v1241 = vadd.f32 %v1240, %v1226
        %v1242 = vadd.f32 %v1241, %v1227
        %v1243 = vadd.f32 %v1242, %v1228
        %v1244 = vadd.f32 %v1243, %v1229
        %v1245 = vrot.slane %v1244, 4
        %v1246 = vadd.f32 %v1244, %v1245
        %v1247 = vrot.slane %v1246, 2
        %v1248 = vadd.f32 %v1246, %v1247
        %v1249 = vrot.slane %v1248, 1
        %v1250 = vadd.f32 %v1248, %v1249
        %v1251 = vadd.f32 %v924, %v1250
        %v1252 = vld [vmem:[#allocation2] sm:$0x1]
        %1254 = vset.pattern.permute.xlu0 0
        %1255 = vperm.xlu0 %1254, %v1252
        %v1256 = vpop.permute.xlu0 %1255
        %v1258 = vperm.slane %v1256, 0
        %v1259 = vadd.f32 %v1251, %v1258
        %1260 = vst [vmem:[%s351] sm:$0x1] %v1259
        %s1261 = sand.u32 %s249, 1
        %s1262 = scalar_lea.sflag [#allocation4], %s1261
        %s1263 = sand.u32 %s249, 1
        %s1264 = scalar_lea.vmem [#allocation3], %s1263
        // Predicated region
        $region61: #{tpu_custom_call.1} parent=59 // pred_check
          %p1265 = pneg %p259
        $region62: #{tpu_custom_call.1} parent=59 // pred_check_branch
          %1267 = sbr.rel (%p1265) target = $region64
        $region63: #{tpu_custom_call.1} parent=59 // pred_region
          %1269 = vsyncadd %s1262, 0
          %s1270 = scalar_lea.hbm %s10, %s26
          %s1272 = sshll.u32 %s1264, 4
          %s1273 = int_to_ptr.vmem [resolvable:$true] %s1272
          %s1274 = sshll.u32 %s1270, 4
          %s1275 = int_to_ptr.hbm [resolvable:$true] %s1274
          %1277 = dma.vmem_to_hbm [thread:$0]  %s1273, 16, %s1275, %s1262
        $region64: #{tpu_custom_call.1} parent=59 // pred_fallthru
          _
      $region60: #{tpu_custom_call.1} parent=5 // pred_fallthru
        _
      %p1278 = scmp.le.s32.totalorder 2, %s21
      // Predicated region
      $region65: #{tpu_custom_call.1} parent=5 // pred_check
        %p1279 = pneg %p1278
      $region66: #{tpu_custom_call.1} parent=5 // pred_check_branch
        %1281 = sbr.rel (%p1279) target = $region68
      $region67: #{tpu_custom_call.1} parent=5 // pred_region
        %s1282 = ssub.s32 %s21, 2
        // Predicated region
        $region69: #{tpu_custom_call.1} parent=67 // pred_check
          %p1283 = pneg %p265
        $region70: #{tpu_custom_call.1} parent=67 // pred_check_branch
          %1285 = sbr.rel (%p1283) target = $region72
        $region71: #{tpu_custom_call.1} parent=67 // pred_region
          %s1286 = sand.u32 %s250, 1
          %s1287 = scalar_lea.sflag [#allocation4], %s1286
          %s1288 = sand.u32 %s250, 1
          %s1289 = scalar_lea.vmem [#allocation3], %s1288
          %1291 = dma.done %s1287, 16
        $region72: #{tpu_custom_call.1} parent=67 // pred_fallthru
          _
      $region68: #{tpu_custom_call.1} parent=5 // pred_fallthru
        _
    $region6: #{tpu_custom_call.1} parent=1 // loop_footer
      %s25 = sadd.s32 1, %s21
    $region7: #{tpu_custom_call.1} parent=1 // loop_footer_branch
      %20 = sbr.rel target = $region3
    $region8: #{tpu_custom_call.1} parent=1 // loop_exit
      _
    %1292 = vsyncpa [#allocation4], 1
    %s1293 = scalar_lea.sflag [#allocation4], 1
    %1294 = vsyncpa %s1293, 1

</llo_original>
